<compile_context>
chip_gen: v6e
topology: v6e:2x2x1
jax: 0.10.0
libtpu: 0.0.40
codegen_flags: <defaults>
</compile_context>

<pallas_src>
import jax
import jax.numpy as jnp
from jax.experimental import pallas as pl
from jax.experimental.pallas import tpu as pltpu


def _sumsq_kernel(m_ref, p_ref, o_ref, acc_ref):
    """Accumulate per-(channel, time) squared error over batch blocks."""
    j = pl.program_id(2)

    @pl.when(j == 0)
    def _init():
        acc_ref[...] = jnp.zeros_like(acc_ref)

    # Hot loop: subtract-square-accumulate only (VPU work; DMA-bound overall).
    d = m_ref[...].astype(jnp.float32) - p_ref[...].astype(jnp.float32)
    acc_ref[...] += jnp.sum(d * d, axis=0)                     # (C, tT) partials

    @pl.when(j == pl.num_programs(2) - 1)
    def _flush():
        # Cross-lane reduce once per (pi, ti); lane-dense (broadcast) store
        # instead of a masked single-lane write; the wrapper reads lane 0.
        ss = jnp.sum(acc_ref[...], axis=1, keepdims=True)      # (C, 1)
        o_ref[...] = jnp.broadcast_to(ss, o_ref.shape)


def _choose_tiles(b_chunk, c, t, block_b=None, block_t=None,
                  target_bytes=2 * 1024 * 1024):
    """Pick (tb, nb, tt, nt) so a padded (tb, C, tT) input block stays within
    `target_bytes` (conservative: 2 inputs x 2 pipeline buffers x 2 MiB = 8 MiB
    plus scratch, below every chip's default scoped-VMEM limit)."""
    c_pad = ((c + 7) // 8) * 8

    # --- time (lane) tile ---
    if block_t is not None:
        assert block_t == t or (t % block_t == 0 and block_t % 128 == 0), (
            "block_t must equal T or be a multiple of 128 dividing T")
        tt = block_t
    else:
        t_pad_full = ((t + 127) // 128) * 128
        if c_pad * t_pad_full * 4 <= target_bytes or t % 128 != 0:
            # Full T per block: either it fits the budget, or it cannot be
            # tiled cleanly without masking.
            # TODO(synk): masked lane tiling for very long T not divisible by 128.
            tt = t
        else:
            cap = max(128, (target_bytes // (c_pad * 4)) // 128 * 128)
            tt, d = 128, 128
            while d <= t:
                if t % d == 0 and d <= cap:
                    tt = d
                d += 128
    nt = t // tt if tt != t else 1

    # --- batch (reduction) tile ---
    tt_pad = ((tt + 127) // 128) * 128
    bytes_per_b = c_pad * tt_pad * 4
    if block_b is not None:
        assert b_chunk % block_b == 0
        tb = block_b
    else:
        cap_b = max(1, target_bytes // bytes_per_b)
        tb = 1
        for d in range(1, b_chunk + 1):
            if b_chunk % d == 0 and d <= cap_b:
                tb = d
    nb = b_chunk // tb
    return tb, nb, tt, nt


def axiswise_rmse_loss(moments, pred, weights=(1.0, 1.0, 1.0), *,
                       block_b=None, block_t=None):
    """JAX/Pallas equivalent of AxisWiseLoss_RMSE.forward."""
    assert moments.shape == pred.shape, f"Shapes are: {moments.shape}, {pred.shape}"
    b, c, t = moments.shape
    assert c == len(weights)

    # Split the batch into (up to) 2 chunks -> both TensorCores on v7x.
    p = 2 if (b % 2 == 0 and b >= 2) else 1
    b_chunk = b // p

    tb, nb, tt, nt = _choose_tiles(b_chunk, c, t, block_b, block_t)

    in_spec = pl.BlockSpec((tb, c, tt), lambda pi, ti, j: (pi * nb + j, 0, ti))
    out_spec = pl.BlockSpec((1, 1, c, 128), lambda pi, ti, j: (pi, ti, 0, 0))

    partial = pl.pallas_call(
        _sumsq_kernel,
        out_shape=jax.ShapeDtypeStruct((p, nt, c, 128), jnp.float32),
        grid_spec=pltpu.PrefetchScalarGridSpec(
            num_scalar_prefetch=0,
            grid=(p, nt, nb),
            in_specs=[in_spec, in_spec],
            out_specs=out_spec,
            scratch_shapes=[pltpu.VMEM((c, tt), jnp.float32)],
        ),
        compiler_params=pltpu.CompilerParams(
            dimension_semantics=("parallel", "parallel", "arbitrary")),
    )(moments, pred)

    # Tiny finalize on C scalars (must happen after combining all partials,
    # since sqrt(sum of partials) != sum of sqrt(partials)).
    ss = jnp.sum(partial[..., 0], axis=(0, 1))                  # (C,)
    mse = ss / jnp.float32(b * t)
    rmse = jnp.sqrt(mse)
    w = jnp.asarray(weights, dtype=jnp.float32)
    return jnp.sum(w * rmse) / jnp.float32(c)


def _reference(moments, pred, weights):
    c = len(weights)
    diff = jnp.transpose(moments - pred, (1, 0, 2)).reshape(c, -1)
    per_ch_rmse = jnp.sqrt(jnp.mean(diff * diff, axis=1))
    return jnp.sum(jnp.asarray(weights, jnp.float32) * per_ch_rmse) / c


if __name__ == "__main__":
    key = jax.random.PRNGKey(0)
    k1, k2 = jax.random.split(key)

    # Shapes implied by the module: (BATCHSIZE, n_channels=len(weights)=3, time)
    B, C, T = 2, 3, 16
    weights = (1.0, 1.0, 1.0)

    moments = jax.random.normal(k1, (B, C, T), dtype=jnp.float32)
    pred = jax.random.normal(k2, (B, C, T), dtype=jnp.float32)

    loss = axiswise_rmse_loss(moments, pred, weights)
    jax.block_until_ready(loss)
    ref = _reference(moments, pred, weights)
    assert jnp.allclose(loss, ref, rtol=1e-5, atol=1e-6), (loss, ref)

    # Test 2: forces a multi-step batch reduction (grid (2, 1, 3)) with
    # non-uniform weights, exercising the accumulate-then-finalize path.
    B2, T2 = 6, 128
    w2 = (1.0, 0.5, 2.0)
    m2 = jax.random.normal(k1, (B2, C, T2), dtype=jnp.float32)
    p2 = jax.random.normal(k2, (B2, C, T2), dtype=jnp.float32)
    loss2 = axiswise_rmse_loss(m2, p2, w2, block_b=1)
    jax.block_until_ready(loss2)
    ref2 = _reference(m2, p2, w2)
    assert jnp.allclose(loss2, ref2, rtol=1e-5, atol=1e-6), (loss2, ref2)

    # Test 3: forces time-axis tiling + multi-step reduction (grid (2, 2, 2))
    # to exercise the long-T path.
    B3, T3 = 4, 256
    w3 = (0.3, 1.7, 1.0)
    m3 = jax.random.normal(k2, (B3, C, T3), dtype=jnp.float32)
    p3 = jax.random.normal(k1, (B3, C, T3), dtype=jnp.float32)
    loss3 = axiswise_rmse_loss(m3, p3, w3, block_b=1, block_t=128)
    jax.block_until_ready(loss3)
    ref3 = _reference(m3, p3, w3)
    assert jnp.allclose(loss3, ref3, rtol=1e-5, atol=1e-6), (loss3, ref3)

    # Test 4: bf16 inputs stream at native width and are upcast in-kernel.
    loss4 = axiswise_rmse_loss(m2.astype(jnp.bfloat16), p2.astype(jnp.bfloat16), w2)
    jax.block_until_ready(loss4)
    ref4 = _reference(m2.astype(jnp.bfloat16).astype(jnp.float32),
                      p2.astype(jnp.bfloat16).astype(jnp.float32), w2)
    assert jnp.allclose(loss4, ref4, rtol=2e-2, atol=2e-2), (loss4, ref4)

    print("KERNEL_OK")
</pallas_src>

<mosaic_0001>
module attributes {stable_mosaic.version = 11 : i64} {
  func.func @_sumsq_kernel(%arg0: i32, %arg1: i32, %arg2: i32, %arg3: memref<1x3x16xf32, #tpu.memory_space<vmem>>, %arg4: memref<1x3x16xf32, #tpu.memory_space<vmem>>, %arg5: memref<1x1x3x128xf32, #tpu.memory_space<vmem>>, %arg6: memref<3x16xf32, #tpu.memory_space<vmem>>) attributes {dimension_semantics = [#tpu.dimension_semantics<parallel>, #tpu.dimension_semantics<parallel>, #tpu.dimension_semantics<arbitrary>], iteration_bounds = array<i64: 2, 1, 1>, scalar_prefetch = 0 : i64, scratch_operands = 1 : i64, tpu.core_type = #tpu.core_type<tc>, window_params = [{transform_indices = @transform_0, window_bounds = array<i64: 1, 3, 16>}, {transform_indices = @transform_1, window_bounds = array<i64: 1, 3, 16>}, {transform_indices = @transform_2, window_bounds = array<i64: 1, 1, 3, 128>}]} {
    %c0_i32 = arith.constant 0 : i32
    %0 = arith.cmpi eq, %arg2, %c0_i32 : i32
    %1 = arith.extui %0 : i1 to i32
    %c0_i32_0 = arith.constant 0 : i32
    %2 = arith.cmpi ne, %1, %c0_i32_0 : i32
    scf.if %2 {
      %cst_12 = arith.constant 0.000000e+00 : f32
      %14 = vector.broadcast %cst_12 : f32 to vector<3x16xf32>
      %c0_13 = arith.constant 0 : index
      %c0_14 = arith.constant 0 : index
      %15 = vector.load %arg6[%c0_13, %c0_14] : memref<3x16xf32, #tpu.memory_space<vmem>>, vector<3x16xf32>
      tpu.vector_store %arg6[%c0_13, %c0_14], %14 {strides = array<i32>} : memref<3x16xf32, #tpu.memory_space<vmem>>, vector<3x16xf32>,
    } else {
    }
    %c0 = arith.constant 0 : index
    %c0_1 = arith.constant 0 : index
    %c0_2 = arith.constant 0 : index
    %3 = vector.load %arg3[%c0, %c0_1, %c0_2] : memref<1x3x16xf32, #tpu.memory_space<vmem>>, vector<1x3x16xf32>
    %c0_3 = arith.constant 0 : index
    %c0_4 = arith.constant 0 : index
    %c0_5 = arith.constant 0 : index
    %4 = vector.load %arg4[%c0_3, %c0_4, %c0_5] : memref<1x3x16xf32, #tpu.memory_space<vmem>>, vector<1x3x16xf32>
    %5 = arith.subf %3, %4 : vector<1x3x16xf32>
    %c0_6 = arith.constant 0 : index
    %c0_7 = arith.constant 0 : index
    %6 = vector.load %arg6[%c0_6, %c0_7] : memref<3x16xf32, #tpu.memory_space<vmem>>, vector<3x16xf32>
    %7 = arith.mulf %5, %5 : vector<1x3x16xf32>
    %cst = arith.constant dense<0.000000e+00> : vector<3x16xf32>
    %8 = vector.multi_reduction <add>, %7, %cst [0] : vector<1x3x16xf32> to vector<3x16xf32>
    %9 = arith.addf %6, %8 : vector<3x16xf32>
    %c0_8 = arith.constant 0 : index
    %c0_9 = arith.constant 0 : index
    %10 = vector.load %arg6[%c0_8, %c0_9] : memref<3x16xf32, #tpu.memory_space<vmem>>, vector<3x16xf32>
    tpu.vector_store %arg6[%c0_8, %c0_9], %9 {strides = array<i32>} : memref<3x16xf32, #tpu.memory_space<vmem>>, vector<3x16xf32>,
    %c0_i32_10 = arith.constant 0 : i32
    %11 = arith.cmpi eq, %arg2, %c0_i32_10 : i32
    %12 = arith.extui %11 : i1 to i32
    %c0_i32_11 = arith.constant 0 : i32
    %13 = arith.cmpi ne, %12, %c0_i32_11 : i32
    scf.if %13 {
      %c0_12 = arith.constant 0 : index
      %c0_13 = arith.constant 0 : index
      %14 = vector.load %arg6[%c0_12, %c0_13] : memref<3x16xf32, #tpu.memory_space<vmem>>, vector<3x16xf32>
      %cst_14 = arith.constant dense<0.000000e+00> : vector<3xf32>
      %15 = vector.multi_reduction <add>, %14, %cst_14 [1] : vector<3x16xf32> to vector<3xf32>
      %16 = vector.shape_cast %15 : vector<3xf32> to vector<3x1xf32>
      %17 = vector.shape_cast %16 : vector<3x1xf32> to vector<1x1x3x1xf32>
      %18 = vector.broadcast %17 : vector<1x1x3x1xf32> to vector<1x1x3x128xf32>
      %c0_15 = arith.constant 0 : index
      %c0_16 = arith.constant 0 : index
      %c0_17 = arith.constant 0 : index
      %c0_18 = arith.constant 0 : index
      %19 = vector.load %arg5[%c0_15, %c0_16, %c0_17, %c0_18] : memref<1x1x3x128xf32, #tpu.memory_space<vmem>>, vector<1x1x3x128xf32>
      tpu.vector_store %arg5[%c0_15, %c0_16, %c0_17, %c0_18], %18 {strides = array<i32>} : memref<1x1x3x128xf32, #tpu.memory_space<vmem>>, vector<1x1x3x128xf32>,
    } else {
    }
    return
  }
  func.func @transform_0(%arg0: i32, %arg1: i32, %arg2: i32) -> (i32, i32, i32) {
    %c1_i32 = arith.constant 1 : i32
    %0 = arith.muli %arg0, %c1_i32 : i32
    %1 = arith.addi %0, %arg2 : i32
    %c0_i32 = arith.constant 0 : i32
    %c0_i32_0 = arith.constant 0 : i32
    return %1, %c0_i32, %arg1 : i32, i32, i32
  }
  func.func @transform_1(%arg0: i32, %arg1: i32, %arg2: i32) -> (i32, i32, i32) {
    %c1_i32 = arith.constant 1 : i32
    %0 = arith.muli %arg0, %c1_i32 : i32
    %1 = arith.addi %0, %arg2 : i32
    %c0_i32 = arith.constant 0 : i32
    %c0_i32_0 = arith.constant 0 : i32
    return %1, %c0_i32, %arg1 : i32, i32, i32
  }
  func.func @transform_2(%arg0: i32, %arg1: i32, %arg2: i32) -> (i32, i32, i32, i32) {
    %c0_i32 = arith.constant 0 : i32
    %c0_i32_0 = arith.constant 0 : i32
    %c0_i32_1 = arith.constant 0 : i32
    return %arg0, %arg1, %c0_i32, %c0_i32_0 : i32, i32, i32, i32
  }
}

</mosaic_0001>

<llo_original>
// kernel: tpu_custom_call.1
$region0: #{tpu_custom_call.1}
  #allocation0 [shape = 'u32[]', space=smem, size = 0x4, offset = 0x4, fixed_abs, tag = 'smem constant byte address 0x4 - core index']
  #allocation1 [shape = 'u32[144,128]{1,0:T(1,128)}', space=vmem, size = 0x12000, scoped, tag = 'internal scratch']
  #allocation2 [shape = 'f32[3,16]{1,0:T(4,128)}', space=vmem, size = 0x800, scoped, tag = 'scratch operand']
  %s0 = inlined_call_operand.vmem [shape: f32[2,3,16], index: 0, kind: input, shape index: {}]
  %s1 = inlined_call_operand.vmem [shape: f32[2,3,16], index: 1, kind: input, shape index: {}]
  %s2 = inlined_call_operand.vmem [shape: f32[2,1,3,128], index: 2, kind: output, shape index: {}]
  %s3 = sld [smem:[#allocation0]]
  $region49: #{tpu_custom_call.1} parent=0
    _
  %s5 = ssub.s32 1, %s3
  %s6 = scalar_select 0, %s5, %s3
  loop: start=0, step=1, limit=4
  $region2: #{tpu_custom_call.1} parent=0 // loop_pre_header
    _
  $region3: #{tpu_custom_call.1} parent=0 // loop_header
    %s8 = sphi 0, %s12
    %p9 = scmp.ge.s32.totalorder %s8, 4
    %s15 = sphi 0, %s34
    %s16 = sphi 0, %s30
    %s17 = sphi 0, %s26
    %s18 = sphi 0, %s15
    %s19 = sphi 0, %s16
    %s20 = sphi 0, %s17
    %s21 = sphi 0, %s18
    %s22 = sphi 0, %s19
    %s23 = sphi 0, %s20
    %s41 = sphi 0, %s43
    %s44 = sphi 0, %s41
    %s45 = sphi 0, %s44
    %s61 = sphi 0, %s45
    %s71 = sphi 0, %s73
    %s74 = sphi 0, %s71
    %s75 = sphi 0, %s74
    %s91 = sphi 0, %s75
    %s99 = sphi 0, %s101
    %s102 = sphi 0, %s99
    %s103 = sphi 0, %s102
    %s119 = sphi 0, %s103
  $region4: #{tpu_custom_call.1} parent=0 // loop_header_branch
    %11 = sbr.rel (%p9) target = $region8
  $region5: #{tpu_custom_call.1} parent=0 // loop_body
    %s13 = ssub.s32 %s8, 1
    %s14 = ssub.s32 %s8, 2
    %s24 = sadd.s32 1, %s17
    %p25 = scmp.ge.s32.totalorder %s24, 1
    %s26 = scalar_select %p25, 0, %s24
    %s27 = sadd.s32 1, %s16
    %s28 = scalar_select %p25, %s27, %s16
    %p29 = scmp.ge.s32.totalorder %s28, 1
    %s30 = scalar_select %p29, 0, %s28
    %s31 = sadd.s32 1, %s15
    %s32 = scalar_select %p29, %s31, %s15
    %p33 = scmp.ge.s32.totalorder %s32, 2
    %s34 = scalar_select %p33, 0, %s32
    %s35 = sadd.s32 %s15, %s17
    %s36 = sadd.s32 %s34, %s26
    %s37 = ssub.s32 %s35, %s36
    %s38 = ssub.s32 %s16, %s30
    %s39 = sor.u32 %s37, %s38
    %p40 = scmp.eq.s32.totalorder %s39, 0
    %s42 = sadd.s32 %s41, 1
    %s43 = scalar_select %p40, %s41, %s42
    %p46 = pneg %p40
    %p47 = scmp.eq.s32.totalorder %s8, 1
    %p48 = por %p46, %p47
    %p49 = scmp.ne.s32.totalorder %s41, %s44
    %p50 = scmp.eq.s32.totalorder %s8, 0
    %p51 = por %p49, %p50
    %p52 = scmp.ne.s32.totalorder %s41, %s44
    %p53 = scmp.eq.s32.totalorder %s13, 1
    %p54 = por %p52, %p53
    %p55 = scmp.ne.s32.totalorder %s44, %s45
    %p56 = scmp.eq.s32.totalorder %s13, 0
    %p57 = por %p55, %p56
    %p58 = scmp.ne.s32.totalorder %s44, %s45
    %p59 = scmp.eq.s32.totalorder %s14, 1
    %p60 = por %p58, %p59
    %p62 = scmp.ne.s32.totalorder %s45, %s61
    %p63 = scmp.eq.s32.totalorder %s14, 0
    %p64 = por %p62, %p63
    %s65 = sadd.s32 %s15, %s17
    %s66 = sadd.s32 %s34, %s26
    %s67 = ssub.s32 %s65, %s66
    %s68 = ssub.s32 %s16, %s30
    %s69 = sor.u32 %s67, %s68
    %p70 = scmp.eq.s32.totalorder %s69, 0
    %s72 = sadd.s32 %s71, 1
    %s73 = scalar_select %p70, %s71, %s72
    %p76 = pneg %p70
    %p77 = scmp.eq.s32.totalorder %s8, 1
    %p78 = por %p76, %p77
    %p79 = scmp.ne.s32.totalorder %s71, %s74
    %p80 = scmp.eq.s32.totalorder %s8, 0
    %p81 = por %p79, %p80
    %p82 = scmp.ne.s32.totalorder %s71, %s74
    %p83 = scmp.eq.s32.totalorder %s13, 1
    %p84 = por %p82, %p83
    %p85 = scmp.ne.s32.totalorder %s74, %s75
    %p86 = scmp.eq.s32.totalorder %s13, 0
    %p87 = por %p85, %p86
    %p88 = scmp.ne.s32.totalorder %s74, %s75
    %p89 = scmp.eq.s32.totalorder %s14, 1
    %p90 = por %p88, %p89
    %p92 = scmp.ne.s32.totalorder %s75, %s91
    %p93 = scmp.eq.s32.totalorder %s14, 0
    %p94 = por %p92, %p93
    %s95 = ssub.s32 %s15, %s34
    %s96 = ssub.s32 %s16, %s30
    %s97 = sor.u32 %s95, %s96
    %p98 = scmp.eq.s32.totalorder %s97, 0
    %s100 = sadd.s32 %s99, 1
    %s101 = scalar_select %p98, %s99, %s100
    %p104 = pneg %p98
    %p105 = scmp.eq.s32.totalorder %s8, 1
    %p106 = por %p104, %p105
    %p107 = scmp.ne.s32.totalorder %s99, %s102
    %p108 = scmp.eq.s32.totalorder %s8, 0
    %p109 = por %p107, %p108
    %p110 = scmp.ne.s32.totalorder %s99, %s102
    %p111 = scmp.eq.s32.totalorder %s13, 1
    %p112 = por %p110, %p111
    %p113 = scmp.ne.s32.totalorder %s102, %s103
    %p114 = scmp.eq.s32.totalorder %s13, 0
    %p115 = por %p113, %p114
    %p116 = scmp.ne.s32.totalorder %s102, %s103
    %p117 = scmp.eq.s32.totalorder %s14, 1
    %p118 = por %p116, %p117
    %p120 = scmp.ne.s32.totalorder %s103, %s119
    %p121 = scmp.eq.s32.totalorder %s14, 0
    %p122 = por %p120, %p121
    %p123 = scmp.le.s32.totalorder 1, %s8
    %p124 = scmp.lt.s32.totalorder %s8, 3
    %p125 = pnand %p123, %p124
    %p126 = pneg %p125
    // Predicated region
    $region9: #{tpu_custom_call.1} parent=5 // pred_check
      _
    $region10: #{tpu_custom_call.1} parent=5 // pred_check_branch
      %128 = sbr.rel (%p125) target = $region12
    $region11: #{tpu_custom_call.1} parent=5 // pred_region
      %s129 = ssub.s32 %s8, 1
    $region12: #{tpu_custom_call.1} parent=5 // pred_fallthru
      _
    %p130 = scmp.lt.s32.totalorder %s8, 2
    // Predicated region
    $region13: #{tpu_custom_call.1} parent=5 // pred_check
      %p131 = pneg %p130
    $region14: #{tpu_custom_call.1} parent=5 // pred_check_branch
      %133 = sbr.rel (%p131) target = $region16
    $region15: #{tpu_custom_call.1} parent=5 // pred_region
      // Predicated region
      $region17: #{tpu_custom_call.1} parent=15 // pred_check
        %p134 = pneg %p51
      $region18: #{tpu_custom_call.1} parent=15 // pred_check_branch
        %136 = sbr.rel (%p134) target = $region20
      $region19: #{tpu_custom_call.1} parent=15 // pred_region
        %s137 = sadd.s32 %s15, %s17
        %p138 = scmp.lt.s32.totalorder %s137, 1
        %s139 = scalar_select %p138, %s137, 1
        %p140 = scmp.lt.s32.totalorder %s16, 0
        %s141 = scalar_select %p140, %s16, 0
        %s142 = sadd.s32 %s141, %s139
        %s143 = smul.addr %s142, 4
        %s144 = scalar_lea.vmem %s0, %s143
        %s145 = sadd.s32 %s15, %s17
      $region20: #{tpu_custom_call.1} parent=15 // pred_fallthru
        _
      // Predicated region
      $region21: #{tpu_custom_call.1} parent=15 // pred_check
        %p146 = pneg %p81
      $region22: #{tpu_custom_call.1} parent=15 // pred_check_branch
        %148 = sbr.rel (%p146) target = $region24
      $region23: #{tpu_custom_call.1} parent=15 // pred_region
        %s149 = sadd.s32 %s15, %s17
        %p150 = scmp.lt.s32.totalorder %s149, 1
        %s151 = scalar_select %p150, %s149, 1
        %p152 = scmp.lt.s32.totalorder %s16, 0
        %s153 = scalar_select %p152, %s16, 0
        %s154 = sadd.s32 %s153, %s151
        %s155 = smul.addr %s154, 4
        %s156 = scalar_lea.vmem %s1, %s155
        %s157 = sadd.s32 %s15, %s17
      $region24: #{tpu_custom_call.1} parent=15 // pred_fallthru
        _
    $region16: #{tpu_custom_call.1} parent=5 // pred_fallthru
      _
    %p158 = scmp.le.s32.totalorder 1, %s8
    %p159 = scmp.lt.s32.totalorder %s8, 3
    %p160 = pnand %p158, %p159
    %p161 = pneg %p160
    // Predicated region
    $region25: #{tpu_custom_call.1} parent=5 // pred_check
      _
    $region26: #{tpu_custom_call.1} parent=5 // pred_check_branch
      %163 = sbr.rel (%p160) target = $region28
    $region27: #{tpu_custom_call.1} parent=5 // pred_region
      %s164 = ssub.s32 %s8, 1
      %s165 = sadd.s32 %s18, %s20
      %p166 = scmp.lt.s32.totalorder %s165, 1
      %s167 = scalar_select %p166, %s165, 1
      %p168 = scmp.lt.s32.totalorder %s19, 0
      %s169 = scalar_select %p168, %s19, 0
      %s170 = sadd.s32 %s169, %s167
      %s171 = smul.addr %s170, 4
      %s172 = scalar_lea.vmem %s0, %s171
      %p173 = pneg %p57
      %p174 = pneg %p54
      %s175 = sadd.s32 %s18, %s20
      %p176 = scmp.lt.s32.totalorder %s175, 1
      %s177 = scalar_select %p176, %s175, 1
      %p178 = scmp.lt.s32.totalorder %s19, 0
      %s179 = scalar_select %p178, %s19, 0
      %s180 = sadd.s32 %s179, %s177
      %s181 = smul.addr %s180, 4
      %s182 = scalar_lea.vmem %s1, %s181
      %p183 = pneg %p87
      %p184 = pneg %p84
      %p185 = pneg %p115
      %p186 = pneg %p112
      %p187 = scmp.lt.s32.totalorder %s18, 1
      %s188 = scalar_select %p187, %s18, 1
      %p189 = scmp.lt.s32.totalorder %s19, 0
      %s190 = scalar_select %p189, %s19, 0
      %s191 = sadd.s32 %s190, %s188
      %s192 = smul.addr %s191, 4
      %s193 = scalar_lea.vmem %s2, %s192
      %s194 = sadd.s32 %s18, %s20
      %p195 = scmp.lt.s32.totalorder %s194, 1
      %s196 = scalar_select %p195, %s194, 1
      %p197 = scmp.lt.s32.totalorder %s19, 0
      %s198 = scalar_select %p197, %s19, 0
      %s199 = sadd.s32 %s198, %s196
      %s200 = smul.addr %s199, 4
      %s201 = scalar_lea.vmem %s0, %s200
      %s202 = sadd.s32 %s18, %s20
      %s203 = sadd.s32 %s18, %s20
      %p204 = scmp.lt.s32.totalorder %s203, 1
      %s205 = scalar_select %p204, %s203, 1
      %p206 = scmp.lt.s32.totalorder %s19, 0
      %s207 = scalar_select %p206, %s19, 0
      %s208 = sadd.s32 %s207, %s205
      %s209 = smul.addr %s208, 4
      %s210 = scalar_lea.vmem %s1, %s209
      %s211 = sadd.s32 %s18, %s20
      %p212 = scmp.lt.s32.totalorder %s18, 1
      %s213 = scalar_select %p212, %s18, 1
      %p214 = scmp.lt.s32.totalorder %s19, 0
      %s215 = scalar_select %p214, %s19, 0
      %s216 = sadd.s32 %s215, %s213
      %s217 = smul.addr %s216, 4
      %s218 = scalar_lea.vmem %s2, %s217
      %p219 = scmp.eq.s32.totalorder %s20, 0
      // Predicated region
      $region29: #{tpu_custom_call.1} parent=27 // pred_check
        %p220 = pneg %p219
      $region30: #{tpu_custom_call.1} parent=27 // pred_check_branch
        %222 = sbr.rel (%p220) target = $region32
      $region31: #{tpu_custom_call.1} parent=27 // pred_region
        %vm223 = vcmask 124928
        %224 = vst.msk [vmem:[#allocation2] sm:$0x7] %vm223, 0.0
      $region32: #{tpu_custom_call.1} parent=27 // pred_fallthru
        _
      %v225 = vld [vmem:[%s201] sm:$0x7]
      %v226 = vld [vmem:[%s210] sm:$0x7]
      %v227 = vsub.f32 %v225, %v226
      %v228 = vld [vmem:[#allocation2] sm:$0x7]
      %v229 = vmul.f32 %v227, %v227
      %v230 = vadd.f32 %v229, 0.0
      %v231 = vadd.f32 %v228, %v230
      %vm232 = vcmask 124928
      %233 = vst.msk [vmem:[#allocation2] sm:$0x7] %vm232, %v231
      // Predicated region
      $region33: #{tpu_custom_call.1} parent=27 // pred_check
        %p234 = pneg %p219
      $region34: #{tpu_custom_call.1} parent=27 // pred_check_branch
        %236 = sbr.rel (%p234) target = $region36
      $region35: #{tpu_custom_call.1} parent=27 // pred_region
        %v237 = vld [vmem:[#allocation2] sm:$0x7]
        %v238 = vsel %vm232, %v237, 0.0
        %239 = vadd.xlane.f32.xlu0 %v238
        %v240 = vpop.xlane.xlu0 %239
        %241 = vst [vmem:[%s218] sm:$0x7] %v240
      $region36: #{tpu_custom_call.1} parent=27 // pred_fallthru
        _
      %p242 = scmp.lt.s32.totalorder %s18, 1
      %s243 = scalar_select %p242, %s18, 1
      %p244 = scmp.lt.s32.totalorder %s19, 0
      %s245 = scalar_select %p244, %s19, 0
      %s246 = sadd.s32 %s245, %s243
      %s247 = smul.addr %s246, 4
      %s248 = scalar_lea.vmem %s2, %s247
      // Predicated region
      $region37: #{tpu_custom_call.1} parent=27 // pred_check
        %p249 = pneg %p112
      $region38: #{tpu_custom_call.1} parent=27 // pred_check_branch
        %251 = sbr.rel (%p249) target = $region40
      $region39: #{tpu_custom_call.1} parent=27 // pred_region
        _
      $region40: #{tpu_custom_call.1} parent=27 // pred_fallthru
        _
    $region28: #{tpu_custom_call.1} parent=5 // pred_fallthru
      _
    %p252 = scmp.le.s32.totalorder 2, %s8
    // Predicated region
    $region41: #{tpu_custom_call.1} parent=5 // pred_check
      %p253 = pneg %p252
    $region42: #{tpu_custom_call.1} parent=5 // pred_check_branch
      %255 = sbr.rel (%p253) target = $region44
    $region43: #{tpu_custom_call.1} parent=5 // pred_region
      %s256 = ssub.s32 %s8, 2
      // Predicated region
      $region45: #{tpu_custom_call.1} parent=43 // pred_check
        %p257 = pneg %p118
      $region46: #{tpu_custom_call.1} parent=43 // pred_check_branch
        %259 = sbr.rel (%p257) target = $region48
      $region47: #{tpu_custom_call.1} parent=43 // pred_region
        %p260 = scmp.lt.s32.totalorder %s21, 1
        %s261 = scalar_select %p260, %s21, 1
        %p262 = scmp.lt.s32.totalorder %s22, 0
        %s263 = scalar_select %p262, %s22, 0
        %s264 = sadd.s32 %s263, %s261
        %s265 = smul.addr %s264, 4
        %s266 = scalar_lea.vmem %s2, %s265
      $region48: #{tpu_custom_call.1} parent=43 // pred_fallthru
        _
    $region44: #{tpu_custom_call.1} parent=5 // pred_fallthru
      _
  $region6: #{tpu_custom_call.1} parent=0 // loop_footer
    %s12 = sadd.s32 1, %s8
  $region7: #{tpu_custom_call.1} parent=0 // loop_footer_branch
    %7 = sbr.rel target = $region3
  $region8: #{tpu_custom_call.1} parent=0 // loop_exit
    _

</llo_original>
